<compile_context>
chip_gen: v6e
topology: v6e:2x2x1
jax: 0.10.0
libtpu: 0.0.40
codegen_flags: <defaults>
</compile_context>

<pallas_src>
import functools

import jax
import jax.numpy as jnp
from jax.experimental import pallas as pl
from jax.experimental.pallas import tpu as pltpu

_SUBLANE = 8  # sublane granularity (second-minor block dim)


def _round_up(v: int, m: int) -> int:
    return ((v + m - 1) // m) * m


def _device_kind() -> str:
    try:
        return jax.devices()[0].device_kind.lower()
    except Exception:
        return ""


def _num_tensorcores() -> int:
    """TensorCores per chip: 2 on megacore / dual-TC parts, else 1."""
    kind = _device_kind()
    if any(t in kind for t in ("v3", "v4", "v5p", "v7")):
        return 2
    return 1


def _lane_multiple(hidden_dim: int) -> int:
    """Feature padding multiple: 256 fills the 2x256x256 MXU on v6e/v7x."""
    kind = _device_kind()
    small_mxu = any(t in kind for t in ("v2", "v3", "v4", "v5"))  # 128x128 MXU
    return 256 if (hidden_dim >= 256 and not small_mxu) else 128


def _activation(name):
    if name == "relu":
        return lambda v: jnp.maximum(v, 0.0)
    if name == "tanh":
        return jnp.tanh
    if name == "elu":
        # Clamp before expm1 so the discarded branch never produces inf.
        return lambda v: jnp.where(v > 0.0, v, jnp.expm1(jnp.minimum(v, 0.0)))
    raise ValueError(f"unsupported activation: {name}")


def mlp_kernel(x_ref, w1_ref, b1_ref, w2_ref, b2_ref, w3_ref, b3_ref, o_ref,
               *, act):
    # Cast x in-kernel (cheap VPU op) so the wrapper never materializes a
    # separate compute-dtype copy of the input in HBM.
    x = x_ref[...].astype(w1_ref.dtype)
    # Hidden layer 1 + activation (f32 MXU accumulation, f32 epilogue).
    h = jnp.dot(x, w1_ref[...], preferred_element_type=jnp.float32)
    h = act(h + b1_ref[...])
    # Hidden layer 2 + activation.
    h = jnp.dot(h.astype(w2_ref.dtype), w2_ref[...],
                preferred_element_type=jnp.float32)
    h = act(h + b2_ref[...])
    # Last layer (no activation).
    out = jnp.dot(h.astype(w3_ref.dtype), w3_ref[...],
                  preferred_element_type=jnp.float32)
    o_ref[...] = (out + b3_ref[...]).astype(o_ref.dtype)


def pad_params(params, *, compute_dtype=jnp.float32):
    """Zero-pad feature dims once at init (not per call).

    * D (first contraction dim) is only rounded to a multiple of 8: the
      (8,128) rule constrains the LAST block dim, and the W1 block covers the
      full array anyway -- no 128-padding waste on small inputs.
    * H / O are rounded to the MXU lane multiple so every dot's N dim is full
      and the output store is lane-dense.
    * Weights are cast to `compute_dtype` (bf16 recommended on all TPU gens);
      biases stay f32 since the epilogue runs on the f32 MXU accumulator.
    """
    (w1, b1), (w2, b2), (w3, b3) = params
    D, H = w1.shape
    O = w3.shape[1]
    lane = _lane_multiple(H)
    Dp = _round_up(D, _SUBLANE)
    Hp = _round_up(H, lane)
    Op = _round_up(O, lane) if O >= 256 else _round_up(O, 128)

    def pad_w(w, rows, cols):
        return jnp.pad(w, ((0, rows - w.shape[0]),
                           (0, cols - w.shape[1]))).astype(compute_dtype)

    def pad_b(b, cols):
        return jnp.pad(b, ((0, 0), (0, cols - b.shape[1]))).astype(jnp.float32)

    padded = (
        (pad_w(w1, Dp, Hp), pad_b(b1, Hp)),
        (pad_w(w2, Hp, Hp), pad_b(b2, Hp)),
        (pad_w(w3, Hp, Op), pad_b(b3, Op)),
    )
    return padded, (D, H, O)


def neural_net_forward(x, padded_params, logical_dims, *,
                       batch_tile=256, activation_fn="relu"):
    """Fused MLP forward.  x: [B, input_dim]; B need not divide the batch tile."""
    (w1, b1), (w2, b2), (w3, b3) = padded_params
    D, H, O = logical_dims
    B = x.shape[0]
    Dp, Hp = w1.shape
    Op = w3.shape[1]

    # Feature-pad x only if D was rounded up to a sublane multiple (no-op when
    # D % 8 == 0).  The batch dim is never padded -- ragged edges are masked.
    if Dp != D:
        x = jnp.pad(x, ((0, 0), (0, Dp - D)))

    # Batch tile: multiple of 8, capped at batch_tile.  Force >= 2 grid steps
    # only on dual-TC chips (so dimension_semantics=('parallel',) shards work);
    # on single-TC chips keep the single largest exact tile (no ragged edge).
    tb = min(batch_tile, _round_up(B, _SUBLANE))
    if _num_tensorcores() >= 2 and tb > _SUBLANE and pl.cdiv(B, tb) < 2:
        tb = max(_SUBLANE, _round_up(pl.cdiv(B, 2), _SUBLANE))
    elif tb >= B:
        tb = B  # block equals the full array dim: always a legal block shape
    grid = (pl.cdiv(B, tb),)

    flops = 2 * B * (Dp * Hp + Hp * Hp + Hp * Op)
    transcendentals = 0 if activation_fn == "relu" else 2 * B * Hp
    weight_bytes = sum(a.size * a.dtype.itemsize
                       for pair in padded_params for a in pair)
    bytes_accessed = (x.size * x.dtype.itemsize + weight_bytes
                      + B * Op * x.dtype.itemsize)
    cost = pl.CostEstimate(flops=flops, transcendentals=transcendentals,
                           bytes_accessed=bytes_accessed)

    # Raise the scoped-VMEM limit only when the resident working set nears the
    # default cap (16 MiB on v5e, 32 MiB on v6e/v7x).
    est = 2 * weight_bytes + 2 * tb * (Dp + Op) * 4 + 3 * tb * Hp * 4
    vmem_limit = min(int(est * 3 // 2), 120 << 20) if est > (12 << 20) else None
    # TODO(synk): for very large hidden_dim (f32 W2 nearing v7x's 64 MiB VMEM,
    # ~Hp>=1.4K), add an 'arbitrary' K grid axis over W2 with an f32 VMEM
    # accumulator (P3) instead of keeping W2 fully resident.

    kernel = functools.partial(mlp_kernel, act=_activation(activation_fn))

    def call(single_buffer_weights):
        if single_buffer_weights:
            # Grid-invariant operands: one VMEM buffer instead of the default
            # two (their block index never changes, so no pipelining needed).
            inv = lambda shape: pl.BlockSpec(shape, lambda i: (0, 0),
                                             pipeline_mode=pl.Buffered(1))
        else:
            inv = lambda shape: pl.BlockSpec(shape, lambda i: (0, 0))
        return pl.pallas_call(
            kernel,
            out_shape=jax.ShapeDtypeStruct((B, Op), x.dtype),
            grid=grid,
            in_specs=[
                pl.BlockSpec((tb, Dp), lambda i: (i, 0)),  # x tile over batch
                inv((Dp, Hp)),   # W1 (resident)
                inv((1, Hp)),    # b1
                inv((Hp, Hp)),   # W2 (resident)
                inv((1, Hp)),    # b2
                inv((Hp, Op)),   # W3 (resident)
                inv((1, Op)),    # b3
            ],
            out_specs=pl.BlockSpec((tb, Op), lambda i: (i, 0)),  # lane-dense
            compiler_params=pltpu.CompilerParams(
                dimension_semantics=("parallel",),
                vmem_limit_bytes=vmem_limit),
            cost_estimate=cost,
        )(x, w1, b1, w2, b2, w3, b3)

    try:
        out = call(True)
    except Exception:
        # This JAX build rejects the single-buffering hint; fall back to the
        # default double-buffered specs (identical results, 2x weight VMEM).
        out = call(False)

    # Only padded feature columns remain to drop (B*Op -> B*O, tiny).  A
    # consumer that tolerates trailing zero columns can use `out` directly.
    return out[:, :O]


# TODO(synk): custom `torso` modules / arbitrary n_hidden_layers would need a
# variadic-ref kernel; this implements the library default (2 hidden layers).


def init_linear(key, fan_in, fan_out):
    """Deterministic init mimicking torch.nn.Linear default (+-1/sqrt(fan_in)).
    Weight returned pre-transposed as [fan_in, fan_out]; bias as [1, fan_out]."""
    kw, kb = jax.random.split(key)
    bound = 1.0 / jnp.sqrt(float(fan_in))
    w = jax.random.uniform(kw, (fan_in, fan_out), jnp.float32, -bound, bound)
    b = jax.random.uniform(kb, (1, fan_out), jnp.float32, -bound, bound)
    return w, b


def reference_forward(x, params, activation_fn="relu"):
    act = _activation(activation_fn)
    (w1, b1), (w2, b2), (w3, b3) = params
    h = act(x @ w1 + b1)
    h = act(h @ w2 + b2)
    return h @ w3 + b3


if __name__ == "__main__":
    # NeuralNet(input_dim=16, output_dim=4, hidden_dim=32, n_hidden_layers=2,
    # activation_fn="relu").  batch=10 deliberately does NOT divide the tile /
    # sublane, exercising the exact-block and masked ragged-edge paths (no
    # wrapper-side batch padding or slicing).
    batch, input_dim, hidden_dim, output_dim = 10, 16, 32, 4

    key = jax.random.PRNGKey(0)
    k_x, k1, k2, k3 = jax.random.split(key, 4)

    x = jax.random.normal(k_x, (batch, input_dim), jnp.float32)
    params = (
        init_linear(k1, input_dim, hidden_dim),   # torso layer 1
        init_linear(k2, hidden_dim, hidden_dim),  # torso layer 2
        init_linear(k3, hidden_dim, output_dim),  # last_layer
    )
    ref = reference_forward(x, params)

    # f32 weights: tight correctness check vs. the pure-JAX reference.
    p_f32, dims = pad_params(params, compute_dtype=jnp.float32)
    out_f32 = jax.block_until_ready(
        neural_net_forward(x, p_f32, dims, activation_fn="relu"))
    assert out_f32.shape == (batch, output_dim)
    assert jnp.allclose(out_f32, ref, atol=1e-5, rtol=1e-5)

    # bf16 weights (recommended production path on all TPU generations; the MXU
    # is bf16-native and weight DMA halves).  f32 accumulation, looser check.
    p_bf16, dims = pad_params(params, compute_dtype=jnp.bfloat16)
    out_bf16 = jax.block_until_ready(
        neural_net_forward(x, p_bf16, dims, activation_fn="relu"))
    assert out_bf16.shape == (batch, output_dim)
    assert jnp.allclose(out_bf16, ref, atol=5e-2, rtol=5e-2)

    print("KERNEL_OK")
</pallas_src>

<mosaic_0001>
module attributes {stable_mosaic.version = 11 : i64} {
  func.func @mlp_kernel(%arg0: i32, %arg1: memref<10x16xf32, #tpu.memory_space<vmem>>, %arg2: memref<16x128xf32, #tpu.memory_space<vmem>>, %arg3: memref<1x128xf32, #tpu.memory_space<vmem>>, %arg4: memref<128x128xf32, #tpu.memory_space<vmem>>, %arg5: memref<1x128xf32, #tpu.memory_space<vmem>>, %arg6: memref<128x128xf32, #tpu.memory_space<vmem>>, %arg7: memref<1x128xf32, #tpu.memory_space<vmem>>, %arg8: memref<10x128xf32, #tpu.memory_space<vmem>>) attributes {dimension_semantics = [#tpu.dimension_semantics<parallel>], iteration_bounds = array<i64: 1>, scalar_prefetch = 0 : i64, scratch_operands = 0 : i64, tpu.core_type = #tpu.core_type<tc>, window_params = [{transform_indices = @transform_0, window_bounds = array<i64: 10, 16>}, {pipeline_mode = #tpu.pipeline_mode<synchronous>, transform_indices = @transform_1, window_bounds = array<i64: 16, 128>}, {pipeline_mode = #tpu.pipeline_mode<synchronous>, transform_indices = @transform_2, window_bounds = array<i64: 1, 128>}, {pipeline_mode = #tpu.pipeline_mode<synchronous>, transform_indices = @transform_3, window_bounds = array<i64: 128, 128>}, {pipeline_mode = #tpu.pipeline_mode<synchronous>, transform_indices = @transform_4, window_bounds = array<i64: 1, 128>}, {pipeline_mode = #tpu.pipeline_mode<synchronous>, transform_indices = @transform_5, window_bounds = array<i64: 128, 128>}, {pipeline_mode = #tpu.pipeline_mode<synchronous>, transform_indices = @transform_6, window_bounds = array<i64: 1, 128>}, {transform_indices = @transform_7, window_bounds = array<i64: 10, 128>}]} {
    %c0 = arith.constant 0 : index
    %c0_0 = arith.constant 0 : index
    %0 = vector.load %arg1[%c0, %c0_0] : memref<10x16xf32, #tpu.memory_space<vmem>>, vector<10x16xf32>
    %c0_1 = arith.constant 0 : index
    %c0_2 = arith.constant 0 : index
    %1 = vector.load %arg2[%c0_1, %c0_2] : memref<16x128xf32, #tpu.memory_space<vmem>>, vector<16x128xf32>
    %cst = arith.constant dense<0.000000e+00> : vector<10x128xf32>
    %2 = tpu.matmul %0, %1, %cst {dimension_numbers = #tpu.dot_dimension_numbers<[1], [0], [0], [1], [0, 0, 1, 1], [], []>} : vector<10x16xf32>, vector<16x128xf32>, vector<10x128xf32> -> vector<10x128xf32>
    %c0_3 = arith.constant 0 : index
    %c0_4 = arith.constant 0 : index
    %3 = vector.load %arg3[%c0_3, %c0_4] : memref<1x128xf32, #tpu.memory_space<vmem>>, vector<1x128xf32>
    %4 = vector.broadcast %3 : vector<1x128xf32> to vector<10x128xf32>
    %5 = arith.addf %2, %4 : vector<10x128xf32>
    %cst_5 = arith.constant 0.000000e+00 : f32
    %6 = vector.broadcast %cst_5 : f32 to vector<10x128xf32>
    %7 = arith.maximumf %5, %6 : vector<10x128xf32>
    %c0_6 = arith.constant 0 : index
    %c0_7 = arith.constant 0 : index
    %8 = vector.load %arg4[%c0_6, %c0_7] : memref<128x128xf32, #tpu.memory_space<vmem>>, vector<128x128xf32>
    %cst_8 = arith.constant dense<0.000000e+00> : vector<10x128xf32>
    %9 = tpu.matmul %7, %8, %cst_8 {dimension_numbers = #tpu.dot_dimension_numbers<[1], [0], [0], [1], [0, 0, 1, 1], [], []>} : vector<10x128xf32>, vector<128x128xf32>, vector<10x128xf32> -> vector<10x128xf32>
    %c0_9 = arith.constant 0 : index
    %c0_10 = arith.constant 0 : index
    %10 = vector.load %arg5[%c0_9, %c0_10] : memref<1x128xf32, #tpu.memory_space<vmem>>, vector<1x128xf32>
    %11 = vector.broadcast %10 : vector<1x128xf32> to vector<10x128xf32>
    %12 = arith.addf %9, %11 : vector<10x128xf32>
    %cst_11 = arith.constant 0.000000e+00 : f32
    %13 = vector.broadcast %cst_11 : f32 to vector<10x128xf32>
    %14 = arith.maximumf %12, %13 : vector<10x128xf32>
    %c0_12 = arith.constant 0 : index
    %c0_13 = arith.constant 0 : index
    %15 = vector.load %arg6[%c0_12, %c0_13] : memref<128x128xf32, #tpu.memory_space<vmem>>, vector<128x128xf32>
    %cst_14 = arith.constant dense<0.000000e+00> : vector<10x128xf32>
    %16 = tpu.matmul %14, %15, %cst_14 {dimension_numbers = #tpu.dot_dimension_numbers<[1], [0], [0], [1], [0, 0, 1, 1], [], []>} : vector<10x128xf32>, vector<128x128xf32>, vector<10x128xf32> -> vector<10x128xf32>
    %c0_15 = arith.constant 0 : index
    %c0_16 = arith.constant 0 : index
    %17 = vector.load %arg7[%c0_15, %c0_16] : memref<1x128xf32, #tpu.memory_space<vmem>>, vector<1x128xf32>
    %18 = vector.broadcast %17 : vector<1x128xf32> to vector<10x128xf32>
    %19 = arith.addf %16, %18 : vector<10x128xf32>
    %c0_17 = arith.constant 0 : index
    %c0_18 = arith.constant 0 : index
    %20 = vector.load %arg8[%c0_17, %c0_18] : memref<10x128xf32, #tpu.memory_space<vmem>>, vector<10x128xf32>
    tpu.vector_store %arg8[%c0_17, %c0_18], %19 {strides = array<i32>} : memref<10x128xf32, #tpu.memory_space<vmem>>, vector<10x128xf32>,
    return
  }
  func.func @transform_0(%arg0: i32) -> (i32, i32) {
    %c0_i32 = arith.constant 0 : i32
    %c0_i32_0 = arith.constant 0 : i32
    return %arg0, %c0_i32 : i32, i32
  }
  func.func @transform_1(%arg0: i32) -> (i32, i32) {
    %c0_i32 = arith.constant 0 : i32
    %c0_i32_0 = arith.constant 0 : i32
    %c0_i32_1 = arith.constant 0 : i32
    return %c0_i32, %c0_i32_0 : i32, i32
  }
  func.func @transform_2(%arg0: i32) -> (i32, i32) {
    %c0_i32 = arith.constant 0 : i32
    %c0_i32_0 = arith.constant 0 : i32
    %c0_i32_1 = arith.constant 0 : i32
    return %c0_i32, %c0_i32_0 : i32, i32
  }
  func.func @transform_3(%arg0: i32) -> (i32, i32) {
    %c0_i32 = arith.constant 0 : i32
    %c0_i32_0 = arith.constant 0 : i32
    %c0_i32_1 = arith.constant 0 : i32
    return %c0_i32, %c0_i32_0 : i32, i32
  }
  func.func @transform_4(%arg0: i32) -> (i32, i32) {
    %c0_i32 = arith.constant 0 : i32
    %c0_i32_0 = arith.constant 0 : i32
    %c0_i32_1 = arith.constant 0 : i32
    return %c0_i32, %c0_i32_0 : i32, i32
  }
  func.func @transform_5(%arg0: i32) -> (i32, i32) {
    %c0_i32 = arith.constant 0 : i32
    %c0_i32_0 = arith.constant 0 : i32
    %c0_i32_1 = arith.constant 0 : i32
    return %c0_i32, %c0_i32_0 : i32, i32
  }
  func.func @transform_6(%arg0: i32) -> (i32, i32) {
    %c0_i32 = arith.constant 0 : i32
    %c0_i32_0 = arith.constant 0 : i32
    %c0_i32_1 = arith.constant 0 : i32
    return %c0_i32, %c0_i32_0 : i32, i32
  }
  func.func @transform_7(%arg0: i32) -> (i32, i32) {
    %c0_i32 = arith.constant 0 : i32
    %c0_i32_0 = arith.constant 0 : i32
    return %arg0, %c0_i32 : i32, i32
  }
}

module attributes {stable_mosaic.version = 11 : i64} {
  func.func @mlp_kernel(%arg0: i32, %arg1: memref<10x16xf32, #tpu.memory_space<vmem>>, %arg2: memref<16x128xf32, #tpu.memory_space<vmem>>, %arg3: memref<1x128xf32, #tpu.memory_space<vmem>>, %arg4: memref<128x128xf32, #tpu.memory_space<vmem>>, %arg5: memref<1x128xf32, #tpu.memory_space<vmem>>, %arg6: memref<128x128xf32, #tpu.memory_space<vmem>>, %arg7: memref<1x128xf32, #tpu.memory_space<vmem>>, %arg8: memref<10x128xf32, #tpu.memory_space<vmem>>) attributes {dimension_semantics = [#tpu.dimension_semantics<parallel>], iteration_bounds = array<i64: 1>, scalar_prefetch = 0 : i64, scratch_operands = 0 : i64, tpu.core_type = #tpu.core_type<tc>, window_params = [{transform_indices = @transform_0, window_bounds = array<i64: 10, 16>}, {pipeline_mode = #tpu.pipeline_mode<synchronous>, transform_indices = @transform_1, window_bounds = array<i64: 16, 128>}, {pipeline_mode = #tpu.pipeline_mode<synchronous>, transform_indices = @transform_2, window_bounds = array<i64: 1, 128>}, {pipeline_mode = #tpu.pipeline_mode<synchronous>, transform_indices = @transform_3, window_bounds = array<i64: 128, 128>}, {pipeline_mode = #tpu.pipeline_mode<synchronous>, transform_indices = @transform_4, window_bounds = array<i64: 1, 128>}, {pipeline_mode = #tpu.pipeline_mode<synchronous>, transform_indices = @transform_5, window_bounds = array<i64: 128, 128>}, {pipeline_mode = #tpu.pipeline_mode<synchronous>, transform_indices = @transform_6, window_bounds = array<i64: 1, 128>}, {transform_indices = @transform_7, window_bounds = array<i64: 10, 128>}]} {
    %c0 = arith.constant 0 : index
    %c0_0 = arith.constant 0 : index
    %0 = vector.load %arg1[%c0, %c0_0] : memref<10x16xf32, #tpu.memory_space<vmem>>, vector<10x16xf32>
    %c0_1 = arith.constant 0 : index
    %c0_2 = arith.constant 0 : index
    %1 = vector.load %arg2[%c0_1, %c0_2] : memref<16x128xf32, #tpu.memory_space<vmem>>, vector<16x128xf32>
    %cst = arith.constant dense<0.000000e+00> : vector<10x128xf32>
    %2 = tpu.matmul %0, %1, %cst {dimension_numbers = #tpu.dot_dimension_numbers<[1], [0], [0], [1], [0, 0, 1, 1], [], []>} : vector<10x16xf32>, vector<16x128xf32>, vector<10x128xf32> -> vector<10x128xf32>
    %c0_3 = arith.constant 0 : index
    %c0_4 = arith.constant 0 : index
    %3 = vector.load %arg3[%c0_3, %c0_4] : memref<1x128xf32, #tpu.memory_space<vmem>>, vector<1x128xf32>
    %4 = vector.broadcast %3 : vector<1x128xf32> to vector<10x128xf32>
    %5 = arith.addf %2, %4 : vector<10x128xf32>
    %cst_5 = arith.constant 0.000000e+00 : f32
    %6 = vector.broadcast %cst_5 : f32 to vector<10x128xf32>
    %7 = arith.maximumf %5, %6 : vector<10x128xf32>
    %c0_6 = arith.constant 0 : index
    %c0_7 = arith.constant 0 : index
    %8 = vector.load %arg4[%c0_6, %c0_7] : memref<128x128xf32, #tpu.memory_space<vmem>>, vector<128x128xf32>
    %cst_8 = arith.constant dense<0.000000e+00> : vector<10x128xf32>
    %9 = tpu.matmul %7, %8, %cst_8 {dimension_numbers = #tpu.dot_dimension_numbers<[1], [0], [0], [1], [0, 0, 1, 1], [], []>} : vector<10x128xf32>, vector<128x128xf32>, vector<10x128xf32> -> vector<10x128xf32>
    %c0_9 = arith.constant 0 : index
    %c0_10 = arith.constant 0 : index
    %10 = vector.load %arg5[%c0_9, %c0_10] : memref<1x128xf32, #tpu.memory_space<vmem>>, vector<1x128xf32>
    %11 = vector.broadcast %10 : vector<1x128xf32> to vector<10x128xf32>
    %12 = arith.addf %9, %11 : vector<10x128xf32>
    %cst_11 = arith.constant 0.000000e+00 : f32
    %13 = vector.broadcast %cst_11 : f32 to vector<10x128xf32>
    %14 = arith.maximumf %12, %13 : vector<10x128xf32>
    %c0_12 = arith.constant 0 : index
    %c0_13 = arith.constant 0 : index
    %15 = vector.load %arg6[%c0_12, %c0_13] : memref<128x128xf32, #tpu.memory_space<vmem>>, vector<128x128xf32>
    %cst_14 = arith.constant dense<0.000000e+00> : vector<10x128xf32>
    %16 = tpu.matmul %14, %15, %cst_14 {dimension_numbers = #tpu.dot_dimension_numbers<[1], [0], [0], [1], [0, 0, 1, 1], [], []>} : vector<10x128xf32>, vector<128x128xf32>, vector<10x128xf32> -> vector<10x128xf32>
    %c0_15 = arith.constant 0 : index
    %c0_16 = arith.constant 0 : index
    %17 = vector.load %arg7[%c0_15, %c0_16] : memref<1x128xf32, #tpu.memory_space<vmem>>, vector<1x128xf32>
    %18 = vector.broadcast %17 : vector<1x128xf32> to vector<10x128xf32>
    %19 = arith.addf %16, %18 : vector<10x128xf32>
    %c0_17 = arith.constant 0 : index
    %c0_18 = arith.constant 0 : index
    %20 = vector.load %arg8[%c0_17, %c0_18] : memref<10x128xf32, #tpu.memory_space<vmem>>, vector<10x128xf32>
    tpu.vector_store %arg8[%c0_17, %c0_18], %19 {strides = array<i32>} : memref<10x128xf32, #tpu.memory_space<vmem>>, vector<10x128xf32>,
    return
  }
  func.func @transform_0(%arg0: i32) -> (i32, i32) {
    %c0_i32 = arith.constant 0 : i32
    %c0_i32_0 = arith.constant 0 : i32
    return %arg0, %c0_i32 : i32, i32
  }
  func.func @transform_1(%arg0: i32) -> (i32, i32) {
    %c0_i32 = arith.constant 0 : i32
    %c0_i32_0 = arith.constant 0 : i32
    %c0_i32_1 = arith.constant 0 : i32
    return %c0_i32, %c0_i32_0 : i32, i32
  }
  func.func @transform_2(%arg0: i32) -> (i32, i32) {
    %c0_i32 = arith.constant 0 : i32
    %c0_i32_0 = arith.constant 0 : i32
    %c0_i32_1 = arith.constant 0 : i32
    return %c0_i32, %c0_i32_0 : i32, i32
  }
  func.func @transform_3(%arg0: i32) -> (i32, i32) {
    %c0_i32 = arith.constant 0 : i32
    %c0_i32_0 = arith.constant 0 : i32
    %c0_i32_1 = arith.constant 0 : i32
    return %c0_i32, %c0_i32_0 : i32, i32
  }
  func.func @transform_4(%arg0: i32) -> (i32, i32) {
    %c0_i32 = arith.constant 0 : i32
    %c0_i32_0 = arith.constant 0 : i32
    %c0_i32_1 = arith.constant 0 : i32
    return %c0_i32, %c0_i32_0 : i32, i32
  }
  func.func @transform_5(%arg0: i32) -> (i32, i32) {
    %c0_i32 = arith.constant 0 : i32
    %c0_i32_0 = arith.constant 0 : i32
    %c0_i32_1 = arith.constant 0 : i32
    return %c0_i32, %c0_i32_0 : i32, i32
  }
  func.func @transform_6(%arg0: i32) -> (i32, i32) {
    %c0_i32 = arith.constant 0 : i32
    %c0_i32_0 = arith.constant 0 : i32
    %c0_i32_1 = arith.constant 0 : i32
    return %c0_i32, %c0_i32_0 : i32, i32
  }
  func.func @transform_7(%arg0: i32) -> (i32, i32) {
    %c0_i32 = arith.constant 0 : i32
    %c0_i32_0 = arith.constant 0 : i32
    return %arg0, %c0_i32 : i32, i32
  }
}

</mosaic_0001>

<llo_original>
// kernel: tpu_custom_call.1
$region0: #{tpu_custom_call.1}
  #allocation0 [shape = 'u32[]', space=smem, size = 0x4, offset = 0x4, fixed_abs, tag = 'smem constant byte address 0x4 - core index']
  #allocation1 [shape = 'u32[144,128]{1,0:T(1,128)}', space=vmem, size = 0x12000, scoped, tag = 'internal scratch']
  %s0 = inlined_call_operand.hbm [shape: f32[10,16], index: 0, kind: input, shape index: {}]
  %s1 = inlined_call_operand.hbm [shape: f32[16,128], index: 1, kind: input, shape index: {}]
  %s2 = inlined_call_operand.vmem [shape: f32[1,128], index: 2, kind: input, shape index: {}]
  %s3 = inlined_call_operand.hbm [shape: f32[128,128], index: 3, kind: input, shape index: {}]
  %s4 = inlined_call_operand.vmem [shape: f32[1,128], index: 4, kind: input, shape index: {}]
  %s5 = inlined_call_operand.hbm [shape: f32[128,128], index: 5, kind: input, shape index: {}]
  %s6 = inlined_call_operand.vmem [shape: f32[1,128], index: 6, kind: input, shape index: {}]
  %s7 = inlined_call_operand.hbm [shape: f32[10,128], index: 7, kind: output, shape index: {}]
  %s8 = sld [smem:[#allocation0]]
  $region54: #{tpu_custom_call.1} parent=0
    _
  %s10 = ssub.s32 1, %s8
  %s11 = scalar_select 0, %s10, %s8
  $region1: #{tpu_custom_call.1} parent=0
    #allocation2 [shape = 'u8[8192]{0}', space=vmem, size = 0x2000, scoped, tag = 'input window, operand 0, single buffered']
    #allocation3 [shape = 's32[1]{0}', space=sflag, size = 0x4, scoped, tag = 'scoped memory for tpu_custom_call.1']
    #allocation4 [shape = 's32[1]{0}', space=sflag, size = 0x4, scoped, tag = 'scoped memory for tpu_custom_call.1']
    #allocation5 [shape = 'u8[8192]{0}', space=vmem, size = 0x2000, scoped, tag = 'input window, operand 1, single buffered']
    #allocation6 [shape = 's32[1]{0}', space=sflag, size = 0x4, scoped, tag = 'scoped memory for tpu_custom_call.1']
    #allocation7 [shape = 'u8[65536]{0}', space=vmem, size = 0x10000, scoped, tag = 'input window, operand 3, single buffered']
    #allocation8 [shape = 'u8[65536]{0}', space=vmem, size = 0x10000, scoped, tag = 'input window, operand 5, single buffered']
    #allocation9 [shape = 's32[1]{0}', space=sflag, size = 0x4, scoped, tag = 'scoped memory for tpu_custom_call.1']
    #allocation10 [shape = 'u8[8192]{0}', space=vmem, size = 0x2000, scoped, tag = 'output window, operand 0, single buffered']
    %12 = vsyncpa [#allocation3], 0
    %13 = vsyncpa [#allocation6], 0
    %14 = vsyncpa [#allocation9], 0
    %15 = vsyncpa [#allocation4], 0
    // Predicated region
    $region2: #{tpu_custom_call.1} parent=1 // pred_check
      _
    $region3: #{tpu_custom_call.1} parent=1 // pred_check_branch
      %17 = sbr.rel (0) target = $region5
    $region4: #{tpu_custom_call.1} parent=1 // pred_region
      %s19 = ssub.s32 256, 256
      %20 = vsyncadd [#allocation3], %s19
      %s21 = sshll.u32 [#allocation2], 4
      %s22 = int_to_ptr.vmem [resolvable:$true] %s21
      %27 = dma.hbm_to_vmem [thread:$0]  %s0, 256, %s22, [#allocation3], 128, 128, 8
    $region5: #{tpu_custom_call.1} parent=1 // pred_fallthru
      _
    // Predicated region
    $region6: #{tpu_custom_call.1} parent=1 // pred_check
      _
    $region7: #{tpu_custom_call.1} parent=1 // pred_check_branch
      %29 = sbr.rel (0) target = $region9
    $region8: #{tpu_custom_call.1} parent=1 // pred_region
      %s31 = ssub.s32 256, 256
      %32 = vsyncadd [#allocation6], %s31
      %s33 = sshll.u32 [#allocation5], 4
      %s34 = int_to_ptr.vmem [resolvable:$true] %s33
      %39 = dma.hbm_to_vmem [thread:$0]  %s1, 256, %s34, [#allocation6], 128, 128, 8
    $region9: #{tpu_custom_call.1} parent=1 // pred_fallthru
      _
    // Predicated region
    $region10: #{tpu_custom_call.1} parent=1 // pred_check
      _
    $region11: #{tpu_custom_call.1} parent=1 // pred_check_branch
      %41 = sbr.rel (0) target = $region13
    $region12: #{tpu_custom_call.1} parent=1 // pred_region
      _
    $region13: #{tpu_custom_call.1} parent=1 // pred_fallthru
      _
    // Predicated region
    $region14: #{tpu_custom_call.1} parent=1 // pred_check
      _
    $region15: #{tpu_custom_call.1} parent=1 // pred_check_branch
      %43 = sbr.rel (0) target = $region17
    $region16: #{tpu_custom_call.1} parent=1 // pred_region
      %s45 = ssub.s32 2048, 2048
      %46 = vsyncadd [#allocation6], %s45
      %s47 = sshll.u32 [#allocation7], 4
      %s48 = int_to_ptr.vmem [resolvable:$true] %s47
      %53 = dma.hbm_to_vmem [thread:$0]  %s3, 2048, %s48, [#allocation6], 128, 128, 8
    $region17: #{tpu_custom_call.1} parent=1 // pred_fallthru
      _
    // Predicated region
    $region18: #{tpu_custom_call.1} parent=1 // pred_check
      _
    $region19: #{tpu_custom_call.1} parent=1 // pred_check_branch
      %55 = sbr.rel (0) target = $region21
    $region20: #{tpu_custom_call.1} parent=1 // pred_region
      _
    $region21: #{tpu_custom_call.1} parent=1 // pred_fallthru
      _
    // Predicated region
    $region22: #{tpu_custom_call.1} parent=1 // pred_check
      _
    $region23: #{tpu_custom_call.1} parent=1 // pred_check_branch
      %57 = sbr.rel (0) target = $region25
    $region24: #{tpu_custom_call.1} parent=1 // pred_region
      %s59 = ssub.s32 2048, 2048
      %60 = vsyncadd [#allocation9], %s59
      %s61 = sshll.u32 [#allocation8], 4
      %s62 = int_to_ptr.vmem [resolvable:$true] %s61
      %67 = dma.hbm_to_vmem [thread:$0]  %s5, 2048, %s62, [#allocation9], 128, 128, 8
    $region25: #{tpu_custom_call.1} parent=1 // pred_fallthru
      _
    // Predicated region
    $region26: #{tpu_custom_call.1} parent=1 // pred_check
      _
    $region27: #{tpu_custom_call.1} parent=1 // pred_check_branch
      %69 = sbr.rel (0) target = $region29
    $region28: #{tpu_custom_call.1} parent=1 // pred_region
      _
    $region29: #{tpu_custom_call.1} parent=1 // pred_fallthru
      _
    // Predicated region
    $region30: #{tpu_custom_call.1} parent=1 // pred_check
      _
    $region31: #{tpu_custom_call.1} parent=1 // pred_check_branch
      %71 = sbr.rel (0) target = $region33
    $region32: #{tpu_custom_call.1} parent=1 // pred_region
      %72 = dma.done [#allocation3], 256
    $region33: #{tpu_custom_call.1} parent=1 // pred_fallthru
      _
    // Predicated region
    $region34: #{tpu_custom_call.1} parent=1 // pred_check
      _
    $region35: #{tpu_custom_call.1} parent=1 // pred_check_branch
      %74 = sbr.rel (0) target = $region37
    $region36: #{tpu_custom_call.1} parent=1 // pred_region
      %75 = dma.done [#allocation6], 256
    $region37: #{tpu_custom_call.1} parent=1 // pred_fallthru
      _
    // Predicated region
    $region38: #{tpu_custom_call.1} parent=1 // pred_check
      _
    $region39: #{tpu_custom_call.1} parent=1 // pred_check_branch
      %77 = sbr.rel (0) target = $region41
    $region40: #{tpu_custom_call.1} parent=1 // pred_region
      %78 = dma.done [#allocation6], 2048
    $region41: #{tpu_custom_call.1} parent=1 // pred_fallthru
      _
    // Predicated region
    $region42: #{tpu_custom_call.1} parent=1 // pred_check
      _
    $region43: #{tpu_custom_call.1} parent=1 // pred_check_branch
      %80 = sbr.rel (0) target = $region45
    $region44: #{tpu_custom_call.1} parent=1 // pred_region
      %81 = dma.done [#allocation9], 2048
    $region45: #{tpu_custom_call.1} parent=1 // pred_fallthru
      _
    %v82 = vld [vmem:[#allocation2] sm:$0xff]
    %v83 = vld [vmem:[#allocation2 + $0x8] sm:$0x3]
    %v84 = vld [vmem:[#allocation5] sm:$0xff]
    %v85 = vld [vmem:[#allocation5 + $0x8] sm:$0xff]
    %v86 = vld [vmem:[%s2] sm:$0x1]
    %v88 = vlaneseq
    %v89 = vshrl.u32 %v88, 7
    %v90 = vsub.s32 0, %v89
    %v91 = vrot.slane %v86, %v90
    %vm93 = vcmask 130048
    %v95 = vsel %vm93, %v82, 0
    %v98 = vsel %vm93, %v83, 0
    %100 = vmatprep.subr.mxu0 0.0
    %101 = vmatpush1.msra.mxu0 0.0
    %102 = vmatprep.subr.mxu0 0.0
    %103 = vmatpush1.msra.mxu0 0.0
    %104 = vmatprep.subr.mxu0 0.0
    %105 = vmatpush1.msra.mxu0 0.0
    %106 = vmatprep.subr.mxu0 0.0
    %107 = vmatpush1.msra.mxu0 0.0
    %108 = vmatprep.subr.mxu0 0.0
    %109 = vmatpush1.msra.mxu0 0.0
    %110 = vmatprep.subr.mxu0 0.0
    %111 = vmatpush1.msra.mxu0 0.0
    %112 = vmatprep.subr.mxu0 0.0
    %113 = vmatpush1.msra.mxu0 0.0
    %114 = vmatprep.subr.mxu0 0.0
    %115 = vmatpush1.msra.mxu0 0.0
    %116 = vmatprep.subr.mxu0 0.0
    %117 = vmatpush1.msra.mxu0 0.0
    %118 = vmatprep.subr.mxu0 0.0
    %119 = vmatpush1.msra.mxu0 0.0
    %120 = vmatprep.subr.mxu0 0.0
    %121 = vmatpush1.msra.mxu0 0.0
    %122 = vmatprep.subr.mxu0 0.0
    %123 = vmatpush1.msra.mxu0 0.0
    %124 = vmatprep.subr.mxu0 0.0
    %125 = vmatpush1.msra.mxu0 0.0
    %126 = vmatprep.subr.mxu0 0.0
    %127 = vmatpush1.msra.mxu0 0.0
    %128 = vmatprep.subr.mxu0 0.0
    %129 = vmatpush1.msra.mxu0 %v85
    %130 = vmatprep.subr.mxu0 0.0
    %131 = vmatpush1.msra.mxu0 %v84
    %132 = vmatprep.subr.mxu0 0.0
    %133 = vmatpush2.msra.mxu0 0.0
    %134 = vmatprep.subr.mxu0 0.0
    %135 = vmatpush2.msra.mxu0 0.0
    %136 = vmatprep.subr.mxu0 0.0
    %137 = vmatpush2.msra.mxu0 0.0
    %138 = vmatprep.subr.mxu0 0.0
    %139 = vmatpush2.msra.mxu0 0.0
    %140 = vmatprep.subr.mxu0 0.0
    %141 = vmatpush2.msra.mxu0 0.0
    %142 = vmatprep.subr.mxu0 0.0
    %143 = vmatpush2.msra.mxu0 0.0
    %144 = vmatprep.subr.mxu0 0.0
    %145 = vmatpush2.msra.mxu0 0.0
    %146 = vmatprep.subr.mxu0 0.0
    %147 = vmatpush2.msra.mxu0 0.0
    %148 = vmatprep.subr.mxu0 0.0
    %149 = vmatpush2.msra.mxu0 0.0
    %150 = vmatprep.subr.mxu0 0.0
    %151 = vmatpush2.msra.mxu0 0.0
    %152 = vmatprep.subr.mxu0 0.0
    %153 = vmatpush2.msra.mxu0 0.0
    %154 = vmatprep.subr.mxu0 0.0
    %155 = vmatpush2.msra.mxu0 0.0
    %156 = vmatprep.subr.mxu0 0.0
    %157 = vmatpush2.msra.mxu0 0.0
    %158 = vmatprep.subr.mxu0 0.0
    %159 = vmatpush2.msra.mxu0 0.0
    %160 = vmatprep.subr.mxu0 0.0
    %161 = vmatpush2.msra.mxu0 0.0
    %162 = vmatprep.subr.mxu0 0.0
    %163 = vmatpush2.msra.mxu0 0.0
    %164 = vmatprep.mubr.f32.mxu0 0.0
    %165 = vmatmul.mubr.f32.gmra.mxu0 %v95
    %v166 = vpop.f32.mrf.mxu0
    %v167 = vadd.f32 %v91, %v166
    %v168 = vpop.f32.mrf.mxu0
    %169 = vmatprep.mubr.f32.mxu0 0.0
    %170 = vmatmul.mubr.f32.gmra.mxu0 %v98
    %v171 = vpop.f32.mrf.mxu0
    %v172 = vadd.f32 %v91, %v171
    %v173 = vpop.f32.mrf.mxu0
    %174 = vdwg.mxu0
    %v175 = vmax.f32 %v167, 0.0
    %v176 = vmax.f32 %v172, 0.0
    %v177 = vld [vmem:[#allocation7] sm:$0xff]
    %v178 = vld [vmem:[#allocation7 + $0x8] sm:$0xff]
    %v179 = vld [vmem:[#allocation7 + $0x10] sm:$0xff]
    %v180 = vld [vmem:[#allocation7 + $0x18] sm:$0xff]
    %v181 = vld [vmem:[#allocation7 + $0x20] sm:$0xff]
    %v182 = vld [vmem:[#allocation7 + $0x28] sm:$0xff]
    %v183 = vld [vmem:[#allocation7 + $0x30] sm:$0xff]
    %v184 = vld [vmem:[#allocation7 + $0x38] sm:$0xff]
    %v185 = vld [vmem:[#allocation7 + $0x40] sm:$0xff]
    %v186 = vld [vmem:[#allocation7 + $0x48] sm:$0xff]
    %v187 = vld [vmem:[#allocation7 + $0x50] sm:$0xff]
    %v188 = vld [vmem:[#allocation7 + $0x58] sm:$0xff]
    %v189 = vld [vmem:[#allocation7 + $0x60] sm:$0xff]
    %v190 = vld [vmem:[#allocation7 + $0x68] sm:$0xff]
    %v191 = vld [vmem:[#allocation7 + $0x70] sm:$0xff]
    %v192 = vld [vmem:[#allocation7 + $0x78] sm:$0xff]
    %v193 = vld [vmem:[%s4] sm:$0x1]
    %v195 = vlaneseq
    %v196 = vshrl.u32 %v195, 7
    %v197 = vsub.s32 0, %v196
    %v198 = vrot.slane %v193, %v197
    %200 = vmatprep.subr.mxu0 0.0
    %201 = vmatpush1.msra.mxu0 %v192
    %202 = vmatprep.subr.mxu0 0.0
    %203 = vmatpush1.msra.mxu0 %v191
    %204 = vmatprep.subr.mxu0 0.0
    %205 = vmatpush1.msra.mxu0 %v190
    %206 = vmatprep.subr.mxu0 0.0
    %207 = vmatpush1.msra.mxu0 %v189
    %208 = vmatprep.subr.mxu0 0.0
    %209 = vmatpush1.msra.mxu0 %v188
    %210 = vmatprep.subr.mxu0 0.0
    %211 = vmatpush1.msra.mxu0 %v187
    %212 = vmatprep.subr.mxu0 0.0
    %213 = vmatpush1.msra.mxu0 %v186
    %214 = vmatprep.subr.mxu0 0.0
    %215 = vmatpush1.msra.mxu0 %v185
    %216 = vmatprep.subr.mxu0 0.0
    %217 = vmatpush1.msra.mxu0 %v184
    %218 = vmatprep.subr.mxu0 0.0
    %219 = vmatpush1.msra.mxu0 %v183
    %220 = vmatprep.subr.mxu0 0.0
    %221 = vmatpush1.msra.mxu0 %v182
    %222 = vmatprep.subr.mxu0 0.0
    %223 = vmatpush1.msra.mxu0 %v181
    %224 = vmatprep.subr.mxu0 0.0
    %225 = vmatpush1.msra.mxu0 %v180
    %226 = vmatprep.subr.mxu0 0.0
    %227 = vmatpush1.msra.mxu0 %v179
    %228 = vmatprep.subr.mxu0 0.0
    %229 = vmatpush1.msra.mxu0 %v178
    %230 = vmatprep.subr.mxu0 0.0
    %231 = vmatpush1.msra.mxu0 %v177
    %232 = vmatprep.subr.mxu0 0.0
    %233 = vmatpush2.msra.mxu0 0.0
    %234 = vmatprep.subr.mxu0 0.0
    %235 = vmatpush2.msra.mxu0 0.0
    %236 = vmatprep.subr.mxu0 0.0
    %237 = vmatpush2.msra.mxu0 0.0
    %238 = vmatprep.subr.mxu0 0.0
    %239 = vmatpush2.msra.mxu0 0.0
    %240 = vmatprep.subr.mxu0 0.0
    %241 = vmatpush2.msra.mxu0 0.0
    %242 = vmatprep.subr.mxu0 0.0
    %243 = vmatpush2.msra.mxu0 0.0
    %244 = vmatprep.subr.mxu0 0.0
    %245 = vmatpush2.msra.mxu0 0.0
    %246 = vmatprep.subr.mxu0 0.0
    %247 = vmatpush2.msra.mxu0 0.0
    %248 = vmatprep.subr.mxu0 0.0
    %249 = vmatpush2.msra.mxu0 0.0
    %250 = vmatprep.subr.mxu0 0.0
    %251 = vmatpush2.msra.mxu0 0.0
    %252 = vmatprep.subr.mxu0 0.0
    %253 = vmatpush2.msra.mxu0 0.0
    %254 = vmatprep.subr.mxu0 0.0
    %255 = vmatpush2.msra.mxu0 0.0
    %256 = vmatprep.subr.mxu0 0.0
    %257 = vmatpush2.msra.mxu0 0.0
    %258 = vmatprep.subr.mxu0 0.0
    %259 = vmatpush2.msra.mxu0 0.0
    %260 = vmatprep.subr.mxu0 0.0
    %261 = vmatpush2.msra.mxu0 0.0
    %262 = vmatprep.subr.mxu0 0.0
    %263 = vmatpush2.msra.mxu0 0.0
    %264 = vmatprep.mubr.f32.mxu0 0.0
    %265 = vmatmul.mubr.f32.gmra.mxu0 %v175
    %v266 = vpop.f32.mrf.mxu0
    %v267 = vadd.f32 %v198, %v266
    %v268 = vpop.f32.mrf.mxu0
    %269 = vmatprep.mubr.f32.mxu0 0.0
    %270 = vmatmul.mubr.f32.gmra.mxu0 %v176
    %v271 = vpop.f32.mrf.mxu0
    %v272 = vadd.f32 %v198, %v271
    %v273 = vpop.f32.mrf.mxu0
    %274 = vdwg.mxu0
    %v275 = vmax.f32 %v267, 0.0
    %v276 = vmax.f32 %v272, 0.0
    %v277 = vld [vmem:[#allocation8] sm:$0xff]
    %v278 = vld [vmem:[#allocation8 + $0x8] sm:$0xff]
    %v279 = vld [vmem:[#allocation8 + $0x10] sm:$0xff]
    %v280 = vld [vmem:[#allocation8 + $0x18] sm:$0xff]
    %v281 = vld [vmem:[#allocation8 + $0x20] sm:$0xff]
    %v282 = vld [vmem:[#allocation8 + $0x28] sm:$0xff]
    %v283 = vld [vmem:[#allocation8 + $0x30] sm:$0xff]
    %v284 = vld [vmem:[#allocation8 + $0x38] sm:$0xff]
    %v285 = vld [vmem:[#allocation8 + $0x40] sm:$0xff]
    %v286 = vld [vmem:[#allocation8 + $0x48] sm:$0xff]
    %v287 = vld [vmem:[#allocation8 + $0x50] sm:$0xff]
    %v288 = vld [vmem:[#allocation8 + $0x58] sm:$0xff]
    %v289 = vld [vmem:[#allocation8 + $0x60] sm:$0xff]
    %v290 = vld [vmem:[#allocation8 + $0x68] sm:$0xff]
    %v291 = vld [vmem:[#allocation8 + $0x70] sm:$0xff]
    %v292 = vld [vmem:[#allocation8 + $0x78] sm:$0xff]
    %v293 = vld [vmem:[%s6] sm:$0x1]
    %v295 = vlaneseq
    %v296 = vshrl.u32 %v295, 7
    %v297 = vsub.s32 0, %v296
    %v298 = vrot.slane %v293, %v297
    %300 = vmatprep.subr.mxu0 0.0
    %301 = vmatpush1.msra.mxu0 %v292
    %302 = vmatprep.subr.mxu0 0.0
    %303 = vmatpush1.msra.mxu0 %v291
    %304 = vmatprep.subr.mxu0 0.0
    %305 = vmatpush1.msra.mxu0 %v290
    %306 = vmatprep.subr.mxu0 0.0
    %307 = vmatpush1.msra.mxu0 %v289
    %308 = vmatprep.subr.mxu0 0.0
    %309 = vmatpush1.msra.mxu0 %v288
    %310 = vmatprep.subr.mxu0 0.0
    %311 = vmatpush1.msra.mxu0 %v287
    %312 = vmatprep.subr.mxu0 0.0
    %313 = vmatpush1.msra.mxu0 %v286
    %314 = vmatprep.subr.mxu0 0.0
    %315 = vmatpush1.msra.mxu0 %v285
    %316 = vmatprep.subr.mxu0 0.0
    %317 = vmatpush1.msra.mxu0 %v284
    %318 = vmatprep.subr.mxu0 0.0
    %319 = vmatpush1.msra.mxu0 %v283
    %320 = vmatprep.subr.mxu0 0.0
    %321 = vmatpush1.msra.mxu0 %v282
    %322 = vmatprep.subr.mxu0 0.0
    %323 = vmatpush1.msra.mxu0 %v281
    %324 = vmatprep.subr.mxu0 0.0
    %325 = vmatpush1.msra.mxu0 %v280
    %326 = vmatprep.subr.mxu0 0.0
    %327 = vmatpush1.msra.mxu0 %v279
    %328 = vmatprep.subr.mxu0 0.0
    %329 = vmatpush1.msra.mxu0 %v278
    %330 = vmatprep.subr.mxu0 0.0
    %331 = vmatpush1.msra.mxu0 %v277
    %332 = vmatprep.subr.mxu0 0.0
    %333 = vmatpush2.msra.mxu0 0.0
    %334 = vmatprep.subr.mxu0 0.0
    %335 = vmatpush2.msra.mxu0 0.0
    %336 = vmatprep.subr.mxu0 0.0
    %337 = vmatpush2.msra.mxu0 0.0
    %338 = vmatprep.subr.mxu0 0.0
    %339 = vmatpush2.msra.mxu0 0.0
    %340 = vmatprep.subr.mxu0 0.0
    %341 = vmatpush2.msra.mxu0 0.0
    %342 = vmatprep.subr.mxu0 0.0
    %343 = vmatpush2.msra.mxu0 0.0
    %344 = vmatprep.subr.mxu0 0.0
    %345 = vmatpush2.msra.mxu0 0.0
    %346 = vmatprep.subr.mxu0 0.0
    %347 = vmatpush2.msra.mxu0 0.0
    %348 = vmatprep.subr.mxu0 0.0
    %349 = vmatpush2.msra.mxu0 0.0
    %350 = vmatprep.subr.mxu0 0.0
    %351 = vmatpush2.msra.mxu0 0.0
    %352 = vmatprep.subr.mxu0 0.0
    %353 = vmatpush2.msra.mxu0 0.0
    %354 = vmatprep.subr.mxu0 0.0
    %355 = vmatpush2.msra.mxu0 0.0
    %356 = vmatprep.subr.mxu0 0.0
    %357 = vmatpush2.msra.mxu0 0.0
    %358 = vmatprep.subr.mxu0 0.0
    %359 = vmatpush2.msra.mxu0 0.0
    %360 = vmatprep.subr.mxu0 0.0
    %361 = vmatpush2.msra.mxu0 0.0
    %362 = vmatprep.subr.mxu0 0.0
    %363 = vmatpush2.msra.mxu0 0.0
    %364 = vmatprep.mubr.f32.mxu0 0.0
    %365 = vmatmul.mubr.f32.gmra.mxu0 %v275
    %v366 = vpop.f32.mrf.mxu0
    %v367 = vadd.f32 %v298, %v366
    %v368 = vpop.f32.mrf.mxu0
    %369 = vmatprep.mubr.f32.mxu0 0.0
    %370 = vmatmul.mubr.f32.gmra.mxu0 %v276
    %v371 = vpop.f32.mrf.mxu0
    %v372 = vadd.f32 %v298, %v371
    %v373 = vpop.f32.mrf.mxu0
    %374 = vdwg.mxu0
    %375 = vst [vmem:[#allocation10] sm:$0xff] %v367
    %376 = vst [vmem:[#allocation10 + $0x8] sm:$0x3] %v372
    // Predicated region
    $region46: #{tpu_custom_call.1} parent=1 // pred_check
      _
    $region47: #{tpu_custom_call.1} parent=1 // pred_check_branch
      %378 = sbr.rel (0) target = $region49
    $region48: #{tpu_custom_call.1} parent=1 // pred_region
      %s380 = ssub.s32 256, 256
      %381 = vsyncadd [#allocation4], %s380
      %s382 = sshll.u32 [#allocation10], 4
      %s383 = int_to_ptr.vmem [resolvable:$true] %s382
      %388 = dma.vmem_to_hbm [thread:$0]  %s383, 256, %s7, [#allocation4], 128, 128, 8
    $region49: #{tpu_custom_call.1} parent=1 // pred_fallthru
      _
    // Predicated region
    $region50: #{tpu_custom_call.1} parent=1 // pred_check
      _
    $region51: #{tpu_custom_call.1} parent=1 // pred_check_branch
      %390 = sbr.rel (0) target = $region53
    $region52: #{tpu_custom_call.1} parent=1 // pred_region
      %391 = dma.done [#allocation4], 256
    $region53: #{tpu_custom_call.1} parent=1 // pred_fallthru
      _
    %392 = vsyncpa [#allocation3], 1
    %393 = vsyncpa [#allocation6], 1
    %394 = vsyncpa [#allocation9], 1
    %395 = vsyncpa [#allocation4], 1

// kernel: tpu_custom_call.1
$region0: #{tpu_custom_call.1}
  #allocation0 [shape = 'u32[]', space=smem, size = 0x4, offset = 0x4, fixed_abs, tag = 'smem constant byte address 0x4 - core index']
  #allocation1 [shape = 'u32[144,128]{1,0:T(1,128)}', space=vmem, size = 0x12000, scoped, tag = 'internal scratch']
  %s0 = inlined_call_operand.hbm [shape: f32[10,16], index: 0, kind: input, shape index: {}]
  %s1 = inlined_call_operand.hbm [shape: f32[16,128], index: 1, kind: input, shape index: {}]
  %s2 = inlined_call_operand.vmem [shape: f32[1,128], index: 2, kind: input, shape index: {}]
  %s3 = inlined_call_operand.hbm [shape: f32[128,128], index: 3, kind: input, shape index: {}]
  %s4 = inlined_call_operand.vmem [shape: f32[1,128], index: 4, kind: input, shape index: {}]
  %s5 = inlined_call_operand.hbm [shape: f32[128,128], index: 5, kind: input, shape index: {}]
  %s6 = inlined_call_operand.vmem [shape: f32[1,128], index: 6, kind: input, shape index: {}]
  %s7 = inlined_call_operand.hbm [shape: f32[10,128], index: 7, kind: output, shape index: {}]
  %s8 = sld [smem:[#allocation0]]
  $region54: #{tpu_custom_call.1} parent=0
    _
  %s10 = ssub.s32 1, %s8
  %s11 = scalar_select 0, %s10, %s8
  $region1: #{tpu_custom_call.1} parent=0
    #allocation2 [shape = 'u8[8192]{0}', space=vmem, size = 0x2000, scoped, tag = 'input window, operand 0, single buffered']
    #allocation3 [shape = 's32[1]{0}', space=sflag, size = 0x4, scoped, tag = 'scoped memory for tpu_custom_call.1']
    #allocation4 [shape = 's32[1]{0}', space=sflag, size = 0x4, scoped, tag = 'scoped memory for tpu_custom_call.1']
    #allocation5 [shape = 'u8[8192]{0}', space=vmem, size = 0x2000, scoped, tag = 'input window, operand 1, single buffered']
    #allocation6 [shape = 's32[1]{0}', space=sflag, size = 0x4, scoped, tag = 'scoped memory for tpu_custom_call.1']
    #allocation7 [shape = 'u8[65536]{0}', space=vmem, size = 0x10000, scoped, tag = 'input window, operand 3, single buffered']
    #allocation8 [shape = 'u8[65536]{0}', space=vmem, size = 0x10000, scoped, tag = 'input window, operand 5, single buffered']
    #allocation9 [shape = 's32[1]{0}', space=sflag, size = 0x4, scoped, tag = 'scoped memory for tpu_custom_call.1']
    #allocation10 [shape = 'u8[8192]{0}', space=vmem, size = 0x2000, scoped, tag = 'output window, operand 0, single buffered']
    %12 = vsyncpa [#allocation3], 0
    %13 = vsyncpa [#allocation6], 0
    %14 = vsyncpa [#allocation9], 0
    %15 = vsyncpa [#allocation4], 0
    // Predicated region
    $region2: #{tpu_custom_call.1} parent=1 // pred_check
      _
    $region3: #{tpu_custom_call.1} parent=1 // pred_check_branch
      %17 = sbr.rel (0) target = $region5
    $region4: #{tpu_custom_call.1} parent=1 // pred_region
      %s19 = ssub.s32 256, 256
      %20 = vsyncadd [#allocation3], %s19
      %s21 = sshll.u32 [#allocation2], 4
      %s22 = int_to_ptr.vmem [resolvable:$true] %s21
      %27 = dma.hbm_to_vmem [thread:$0]  %s0, 256, %s22, [#allocation3], 128, 128, 8
    $region5: #{tpu_custom_call.1} parent=1 // pred_fallthru
      _
    // Predicated region
    $region6: #{tpu_custom_call.1} parent=1 // pred_check
      _
    $region7: #{tpu_custom_call.1} parent=1 // pred_check_branch
      %29 = sbr.rel (0) target = $region9
    $region8: #{tpu_custom_call.1} parent=1 // pred_region
      %s31 = ssub.s32 256, 256
      %32 = vsyncadd [#allocation6], %s31
      %s33 = sshll.u32 [#allocation5], 4
      %s34 = int_to_ptr.vmem [resolvable:$true] %s33
      %39 = dma.hbm_to_vmem [thread:$0]  %s1, 256, %s34, [#allocation6], 128, 128, 8
    $region9: #{tpu_custom_call.1} parent=1 // pred_fallthru
      _
    // Predicated region
    $region10: #{tpu_custom_call.1} parent=1 // pred_check
      _
    $region11: #{tpu_custom_call.1} parent=1 // pred_check_branch
      %41 = sbr.rel (0) target = $region13
    $region12: #{tpu_custom_call.1} parent=1 // pred_region
      _
    $region13: #{tpu_custom_call.1} parent=1 // pred_fallthru
      _
    // Predicated region
    $region14: #{tpu_custom_call.1} parent=1 // pred_check
      _
    $region15: #{tpu_custom_call.1} parent=1 // pred_check_branch
      %43 = sbr.rel (0) target = $region17
    $region16: #{tpu_custom_call.1} parent=1 // pred_region
      %s45 = ssub.s32 2048, 2048
      %46 = vsyncadd [#allocation6], %s45
      %s47 = sshll.u32 [#allocation7], 4
      %s48 = int_to_ptr.vmem [resolvable:$true] %s47
      %53 = dma.hbm_to_vmem [thread:$0]  %s3, 2048, %s48, [#allocation6], 128, 128, 8
    $region17: #{tpu_custom_call.1} parent=1 // pred_fallthru
      _
    // Predicated region
    $region18: #{tpu_custom_call.1} parent=1 // pred_check
      _
    $region19: #{tpu_custom_call.1} parent=1 // pred_check_branch
      %55 = sbr.rel (0) target = $region21
    $region20: #{tpu_custom_call.1} parent=1 // pred_region
      _
    $region21: #{tpu_custom_call.1} parent=1 // pred_fallthru
      _
    // Predicated region
    $region22: #{tpu_custom_call.1} parent=1 // pred_check
      _
    $region23: #{tpu_custom_call.1} parent=1 // pred_check_branch
      %57 = sbr.rel (0) target = $region25
    $region24: #{tpu_custom_call.1} parent=1 // pred_region
      %s59 = ssub.s32 2048, 2048
      %60 = vsyncadd [#allocation9], %s59
      %s61 = sshll.u32 [#allocation8], 4
      %s62 = int_to_ptr.vmem [resolvable:$true] %s61
      %67 = dma.hbm_to_vmem [thread:$0]  %s5, 2048, %s62, [#allocation9], 128, 128, 8
    $region25: #{tpu_custom_call.1} parent=1 // pred_fallthru
      _
    // Predicated region
    $region26: #{tpu_custom_call.1} parent=1 // pred_check
      _
    $region27: #{tpu_custom_call.1} parent=1 // pred_check_branch
      %69 = sbr.rel (0) target = $region29
    $region28: #{tpu_custom_call.1} parent=1 // pred_region
      _
    $region29: #{tpu_custom_call.1} parent=1 // pred_fallthru
      _
    // Predicated region
    $region30: #{tpu_custom_call.1} parent=1 // pred_check
      _
    $region31: #{tpu_custom_call.1} parent=1 // pred_check_branch
      %71 = sbr.rel (0) target = $region33
    $region32: #{tpu_custom_call.1} parent=1 // pred_region
      %72 = dma.done [#allocation3], 256
    $region33: #{tpu_custom_call.1} parent=1 // pred_fallthru
      _
    // Predicated region
    $region34: #{tpu_custom_call.1} parent=1 // pred_check
      _
    $region35: #{tpu_custom_call.1} parent=1 // pred_check_branch
      %74 = sbr.rel (0) target = $region37
    $region36: #{tpu_custom_call.1} parent=1 // pred_region
      %75 = dma.done [#allocation6], 256
    $region37: #{tpu_custom_call.1} parent=1 // pred_fallthru
      _
    // Predicated region
    $region38: #{tpu_custom_call.1} parent=1 // pred_check
      _
    $region39: #{tpu_custom_call.1} parent=1 // pred_check_branch
      %77 = sbr.rel (0) target = $region41
    $region40: #{tpu_custom_call.1} parent=1 // pred_region
      %78 = dma.done [#allocation6], 2048
    $region41: #{tpu_custom_call.1} parent=1 // pred_fallthru
      _
    // Predicated region
    $region42: #{tpu_custom_call.1} parent=1 // pred_check
      _
    $region43: #{tpu_custom_call.1} parent=1 // pred_check_branch
      %80 = sbr.rel (0) target = $region45
    $region44: #{tpu_custom_call.1} parent=1 // pred_region
      %81 = dma.done [#allocation9], 2048
    $region45: #{tpu_custom_call.1} parent=1 // pred_fallthru
      _
    %v82 = vld [vmem:[#allocation2] sm:$0xff]
    %v83 = vld [vmem:[#allocation2 + $0x8] sm:$0x3]
    %v84 = vld [vmem:[#allocation5] sm:$0xff]
    %v85 = vld [vmem:[#allocation5 + $0x8] sm:$0xff]
    %v86 = vld [vmem:[%s2] sm:$0x1]
    %v88 = vlaneseq
    %v89 = vshrl.u32 %v88, 7
    %v90 = vsub.s32 0, %v89
    %v91 = vrot.slane %v86, %v90
    %vm93 = vcmask 130048
    %v95 = vsel %vm93, %v82, 0
    %v98 = vsel %vm93, %v83, 0
    %100 = vmatprep.subr.mxu0 0.0
    %101 = vmatpush1.msra.mxu0 0.0
    %102 = vmatprep.subr.mxu0 0.0
    %103 = vmatpush1.msra.mxu0 0.0
    %104 = vmatprep.subr.mxu0 0.0
    %105 = vmatpush1.msra.mxu0 0.0
    %106 = vmatprep.subr.mxu0 0.0
    %107 = vmatpush1.msra.mxu0 0.0
    %108 = vmatprep.subr.mxu0 0.0
    %109 = vmatpush1.msra.mxu0 0.0
    %110 = vmatprep.subr.mxu0 0.0
    %111 = vmatpush1.msra.mxu0 0.0
    %112 = vmatprep.subr.mxu0 0.0
    %113 = vmatpush1.msra.mxu0 0.0
    %114 = vmatprep.subr.mxu0 0.0
    %115 = vmatpush1.msra.mxu0 0.0
    %116 = vmatprep.subr.mxu0 0.0
    %117 = vmatpush1.msra.mxu0 0.0
    %118 = vmatprep.subr.mxu0 0.0
    %119 = vmatpush1.msra.mxu0 0.0
    %120 = vmatprep.subr.mxu0 0.0
    %121 = vmatpush1.msra.mxu0 0.0
    %122 = vmatprep.subr.mxu0 0.0
    %123 = vmatpush1.msra.mxu0 0.0
    %124 = vmatprep.subr.mxu0 0.0
    %125 = vmatpush1.msra.mxu0 0.0
    %126 = vmatprep.subr.mxu0 0.0
    %127 = vmatpush1.msra.mxu0 0.0
    %128 = vmatprep.subr.mxu0 0.0
    %129 = vmatpush1.msra.mxu0 %v85
    %130 = vmatprep.subr.mxu0 0.0
    %131 = vmatpush1.msra.mxu0 %v84
    %132 = vmatprep.subr.mxu0 0.0
    %133 = vmatpush2.msra.mxu0 0.0
    %134 = vmatprep.subr.mxu0 0.0
    %135 = vmatpush2.msra.mxu0 0.0
    %136 = vmatprep.subr.mxu0 0.0
    %137 = vmatpush2.msra.mxu0 0.0
    %138 = vmatprep.subr.mxu0 0.0
    %139 = vmatpush2.msra.mxu0 0.0
    %140 = vmatprep.subr.mxu0 0.0
    %141 = vmatpush2.msra.mxu0 0.0
    %142 = vmatprep.subr.mxu0 0.0
    %143 = vmatpush2.msra.mxu0 0.0
    %144 = vmatprep.subr.mxu0 0.0
    %145 = vmatpush2.msra.mxu0 0.0
    %146 = vmatprep.subr.mxu0 0.0
    %147 = vmatpush2.msra.mxu0 0.0
    %148 = vmatprep.subr.mxu0 0.0
    %149 = vmatpush2.msra.mxu0 0.0
    %150 = vmatprep.subr.mxu0 0.0
    %151 = vmatpush2.msra.mxu0 0.0
    %152 = vmatprep.subr.mxu0 0.0
    %153 = vmatpush2.msra.mxu0 0.0
    %154 = vmatprep.subr.mxu0 0.0
    %155 = vmatpush2.msra.mxu0 0.0
    %156 = vmatprep.subr.mxu0 0.0
    %157 = vmatpush2.msra.mxu0 0.0
    %158 = vmatprep.subr.mxu0 0.0
    %159 = vmatpush2.msra.mxu0 0.0
    %160 = vmatprep.subr.mxu0 0.0
    %161 = vmatpush2.msra.mxu0 0.0
    %162 = vmatprep.subr.mxu0 0.0
    %163 = vmatpush2.msra.mxu0 0.0
    %164 = vmatprep.mubr.f32.mxu0 0.0
    %165 = vmatmul.mubr.f32.gmra.mxu0 %v95
    %v166 = vpop.f32.mrf.mxu0
    %v167 = vadd.f32 %v91, %v166
    %v168 = vpop.f32.mrf.mxu0
    %169 = vmatprep.mubr.f32.mxu0 0.0
    %170 = vmatmul.mubr.f32.gmra.mxu0 %v98
    %v171 = vpop.f32.mrf.mxu0
    %v172 = vadd.f32 %v91, %v171
    %v173 = vpop.f32.mrf.mxu0
    %174 = vdwg.mxu0
    %v175 = vmax.f32 %v167, 0.0
    %v176 = vmax.f32 %v172, 0.0
    %v177 = vld [vmem:[#allocation7] sm:$0xff]
    %v178 = vld [vmem:[#allocation7 + $0x8] sm:$0xff]
    %v179 = vld [vmem:[#allocation7 + $0x10] sm:$0xff]
    %v180 = vld [vmem:[#allocation7 + $0x18] sm:$0xff]
    %v181 = vld [vmem:[#allocation7 + $0x20] sm:$0xff]
    %v182 = vld [vmem:[#allocation7 + $0x28] sm:$0xff]
    %v183 = vld [vmem:[#allocation7 + $0x30] sm:$0xff]
    %v184 = vld [vmem:[#allocation7 + $0x38] sm:$0xff]
    %v185 = vld [vmem:[#allocation7 + $0x40] sm:$0xff]
    %v186 = vld [vmem:[#allocation7 + $0x48] sm:$0xff]
    %v187 = vld [vmem:[#allocation7 + $0x50] sm:$0xff]
    %v188 = vld [vmem:[#allocation7 + $0x58] sm:$0xff]
    %v189 = vld [vmem:[#allocation7 + $0x60] sm:$0xff]
    %v190 = vld [vmem:[#allocation7 + $0x68] sm:$0xff]
    %v191 = vld [vmem:[#allocation7 + $0x70] sm:$0xff]
    %v192 = vld [vmem:[#allocation7 + $0x78] sm:$0xff]
    %v193 = vld [vmem:[%s4] sm:$0x1]
    %v195 = vlaneseq
    %v196 = vshrl.u32 %v195, 7
    %v197 = vsub.s32 0, %v196
    %v198 = vrot.slane %v193, %v197
    %200 = vmatprep.subr.mxu0 0.0
    %201 = vmatpush1.msra.mxu0 %v192
    %202 = vmatprep.subr.mxu0 0.0
    %203 = vmatpush1.msra.mxu0 %v191
    %204 = vmatprep.subr.mxu0 0.0
    %205 = vmatpush1.msra.mxu0 %v190
    %206 = vmatprep.subr.mxu0 0.0
    %207 = vmatpush1.msra.mxu0 %v189
    %208 = vmatprep.subr.mxu0 0.0
    %209 = vmatpush1.msra.mxu0 %v188
    %210 = vmatprep.subr.mxu0 0.0
    %211 = vmatpush1.msra.mxu0 %v187
    %212 = vmatprep.subr.mxu0 0.0
    %213 = vmatpush1.msra.mxu0 %v186
    %214 = vmatprep.subr.mxu0 0.0
    %215 = vmatpush1.msra.mxu0 %v185
    %216 = vmatprep.subr.mxu0 0.0
    %217 = vmatpush1.msra.mxu0 %v184
    %218 = vmatprep.subr.mxu0 0.0
    %219 = vmatpush1.msra.mxu0 %v183
    %220 = vmatprep.subr.mxu0 0.0
    %221 = vmatpush1.msra.mxu0 %v182
    %222 = vmatprep.subr.mxu0 0.0
    %223 = vmatpush1.msra.mxu0 %v181
    %224 = vmatprep.subr.mxu0 0.0
    %225 = vmatpush1.msra.mxu0 %v180
    %226 = vmatprep.subr.mxu0 0.0
    %227 = vmatpush1.msra.mxu0 %v179
    %228 = vmatprep.subr.mxu0 0.0
    %229 = vmatpush1.msra.mxu0 %v178
    %230 = vmatprep.subr.mxu0 0.0
    %231 = vmatpush1.msra.mxu0 %v177
    %232 = vmatprep.subr.mxu0 0.0
    %233 = vmatpush2.msra.mxu0 0.0
    %234 = vmatprep.subr.mxu0 0.0
    %235 = vmatpush2.msra.mxu0 0.0
    %236 = vmatprep.subr.mxu0 0.0
    %237 = vmatpush2.msra.mxu0 0.0
    %238 = vmatprep.subr.mxu0 0.0
    %239 = vmatpush2.msra.mxu0 0.0
    %240 = vmatprep.subr.mxu0 0.0
    %241 = vmatpush2.msra.mxu0 0.0
    %242 = vmatprep.subr.mxu0 0.0
    %243 = vmatpush2.msra.mxu0 0.0
    %244 = vmatprep.subr.mxu0 0.0
    %245 = vmatpush2.msra.mxu0 0.0
    %246 = vmatprep.subr.mxu0 0.0
    %247 = vmatpush2.msra.mxu0 0.0
    %248 = vmatprep.subr.mxu0 0.0
    %249 = vmatpush2.msra.mxu0 0.0
    %250 = vmatprep.subr.mxu0 0.0
    %251 = vmatpush2.msra.mxu0 0.0
    %252 = vmatprep.subr.mxu0 0.0
    %253 = vmatpush2.msra.mxu0 0.0
    %254 = vmatprep.subr.mxu0 0.0
    %255 = vmatpush2.msra.mxu0 0.0
    %256 = vmatprep.subr.mxu0 0.0
    %257 = vmatpush2.msra.mxu0 0.0
    %258 = vmatprep.subr.mxu0 0.0
    %259 = vmatpush2.msra.mxu0 0.0
    %260 = vmatprep.subr.mxu0 0.0
    %261 = vmatpush2.msra.mxu0 0.0
    %262 = vmatprep.subr.mxu0 0.0
    %263 = vmatpush2.msra.mxu0 0.0
    %264 = vmatprep.mubr.f32.mxu0 0.0
    %265 = vmatmul.mubr.f32.gmra.mxu0 %v175
    %v266 = vpop.f32.mrf.mxu0
    %v267 = vadd.f32 %v198, %v266
    %v268 = vpop.f32.mrf.mxu0
    %269 = vmatprep.mubr.f32.mxu0 0.0
    %270 = vmatmul.mubr.f32.gmra.mxu0 %v176
    %v271 = vpop.f32.mrf.mxu0
    %v272 = vadd.f32 %v198, %v271
    %v273 = vpop.f32.mrf.mxu0
    %274 = vdwg.mxu0
    %v275 = vmax.f32 %v267, 0.0
    %v276 = vmax.f32 %v272, 0.0
    %v277 = vld [vmem:[#allocation8] sm:$0xff]
    %v278 = vld [vmem:[#allocation8 + $0x8] sm:$0xff]
    %v279 = vld [vmem:[#allocation8 + $0x10] sm:$0xff]
    %v280 = vld [vmem:[#allocation8 + $0x18] sm:$0xff]
    %v281 = vld [vmem:[#allocation8 + $0x20] sm:$0xff]
    %v282 = vld [vmem:[#allocation8 + $0x28] sm:$0xff]
    %v283 = vld [vmem:[#allocation8 + $0x30] sm:$0xff]
    %v284 = vld [vmem:[#allocation8 + $0x38] sm:$0xff]
    %v285 = vld [vmem:[#allocation8 + $0x40] sm:$0xff]
    %v286 = vld [vmem:[#allocation8 + $0x48] sm:$0xff]
    %v287 = vld [vmem:[#allocation8 + $0x50] sm:$0xff]
    %v288 = vld [vmem:[#allocation8 + $0x58] sm:$0xff]
    %v289 = vld [vmem:[#allocation8 + $0x60] sm:$0xff]
    %v290 = vld [vmem:[#allocation8 + $0x68] sm:$0xff]
    %v291 = vld [vmem:[#allocation8 + $0x70] sm:$0xff]
    %v292 = vld [vmem:[#allocation8 + $0x78] sm:$0xff]
    %v293 = vld [vmem:[%s6] sm:$0x1]
    %v295 = vlaneseq
    %v296 = vshrl.u32 %v295, 7
    %v297 = vsub.s32 0, %v296
    %v298 = vrot.slane %v293, %v297
    %300 = vmatprep.subr.mxu0 0.0
    %301 = vmatpush1.msra.mxu0 %v292
    %302 = vmatprep.subr.mxu0 0.0
    %303 = vmatpush1.msra.mxu0 %v291
    %304 = vmatprep.subr.mxu0 0.0
    %305 = vmatpush1.msra.mxu0 %v290
    %306 = vmatprep.subr.mxu0 0.0
    %307 = vmatpush1.msra.mxu0 %v289
    %308 = vmatprep.subr.mxu0 0.0
    %309 = vmatpush1.msra.mxu0 %v288
    %310 = vmatprep.subr.mxu0 0.0
    %311 = vmatpush1.msra.mxu0 %v287
    %312 = vmatprep.subr.mxu0 0.0
    %313 = vmatpush1.msra.mxu0 %v286
    %314 = vmatprep.subr.mxu0 0.0
    %315 = vmatpush1.msra.mxu0 %v285
    %316 = vmatprep.subr.mxu0 0.0
    %317 = vmatpush1.msra.mxu0 %v284
    %318 = vmatprep.subr.mxu0 0.0
    %319 = vmatpush1.msra.mxu0 %v283
    %320 = vmatprep.subr.mxu0 0.0
    %321 = vmatpush1.msra.mxu0 %v282
    %322 = vmatprep.subr.mxu0 0.0
    %323 = vmatpush1.msra.mxu0 %v281
    %324 = vmatprep.subr.mxu0 0.0
    %325 = vmatpush1.msra.mxu0 %v280
    %326 = vmatprep.subr.mxu0 0.0
    %327 = vmatpush1.msra.mxu0 %v279
    %328 = vmatprep.subr.mxu0 0.0
    %329 = vmatpush1.msra.mxu0 %v278
    %330 = vmatprep.subr.mxu0 0.0
    %331 = vmatpush1.msra.mxu0 %v277
    %332 = vmatprep.subr.mxu0 0.0
    %333 = vmatpush2.msra.mxu0 0.0
    %334 = vmatprep.subr.mxu0 0.0
    %335 = vmatpush2.msra.mxu0 0.0
    %336 = vmatprep.subr.mxu0 0.0
    %337 = vmatpush2.msra.mxu0 0.0
    %338 = vmatprep.subr.mxu0 0.0
    %339 = vmatpush2.msra.mxu0 0.0
    %340 = vmatprep.subr.mxu0 0.0
    %341 = vmatpush2.msra.mxu0 0.0
    %342 = vmatprep.subr.mxu0 0.0
    %343 = vmatpush2.msra.mxu0 0.0
    %344 = vmatprep.subr.mxu0 0.0
    %345 = vmatpush2.msra.mxu0 0.0
    %346 = vmatprep.subr.mxu0 0.0
    %347 = vmatpush2.msra.mxu0 0.0
    %348 = vmatprep.subr.mxu0 0.0
    %349 = vmatpush2.msra.mxu0 0.0
    %350 = vmatprep.subr.mxu0 0.0
    %351 = vmatpush2.msra.mxu0 0.0
    %352 = vmatprep.subr.mxu0 0.0
    %353 = vmatpush2.msra.mxu0 0.0
    %354 = vmatprep.subr.mxu0 0.0
    %355 = vmatpush2.msra.mxu0 0.0
    %356 = vmatprep.subr.mxu0 0.0
    %357 = vmatpush2.msra.mxu0 0.0
    %358 = vmatprep.subr.mxu0 0.0
    %359 = vmatpush2.msra.mxu0 0.0
    %360 = vmatprep.subr.mxu0 0.0
    %361 = vmatpush2.msra.mxu0 0.0
    %362 = vmatprep.subr.mxu0 0.0
    %363 = vmatpush2.msra.mxu0 0.0
    %364 = vmatprep.mubr.f32.mxu0 0.0
    %365 = vmatmul.mubr.f32.gmra.mxu0 %v275
    %v366 = vpop.f32.mrf.mxu0
    %v367 = vadd.f32 %v298, %v366
    %v368 = vpop.f32.mrf.mxu0
    %369 = vmatprep.mubr.f32.mxu0 0.0
    %370 = vmatmul.mubr.f32.gmra.mxu0 %v276
    %v371 = vpop.f32.mrf.mxu0
    %v372 = vadd.f32 %v298, %v371
    %v373 = vpop.f32.mrf.mxu0
    %374 = vdwg.mxu0
    %375 = vst [vmem:[#allocation10] sm:$0xff] %v367
    %376 = vst [vmem:[#allocation10 + $0x8] sm:$0x3] %v372
    // Predicated region
    $region46: #{tpu_custom_call.1} parent=1 // pred_check
      _
    $region47: #{tpu_custom_call.1} parent=1 // pred_check_branch
      %378 = sbr.rel (0) target = $region49
    $region48: #{tpu_custom_call.1} parent=1 // pred_region
      %s380 = ssub.s32 256, 256
      %381 = vsyncadd [#allocation4], %s380
      %s382 = sshll.u32 [#allocation10], 4
      %s383 = int_to_ptr.vmem [resolvable:$true] %s382
      %388 = dma.vmem_to_hbm [thread:$0]  %s383, 256, %s7, [#allocation4], 128, 128, 8
    $region49: #{tpu_custom_call.1} parent=1 // pred_fallthru
      _
    // Predicated region
    $region50: #{tpu_custom_call.1} parent=1 // pred_check
      _
    $region51: #{tpu_custom_call.1} parent=1 // pred_check_branch
      %390 = sbr.rel (0) target = $region53
    $region52: #{tpu_custom_call.1} parent=1 // pred_region
      %391 = dma.done [#allocation4], 256
    $region53: #{tpu_custom_call.1} parent=1 // pred_fallthru
      _
    %392 = vsyncpa [#allocation3], 1
    %393 = vsyncpa [#allocation6], 1
    %394 = vsyncpa [#allocation9], 1
    %395 = vsyncpa [#allocation4], 1

</llo_original>
